<compile_context>
chip_gen: v7x
topology: tpu7x:2x2x1
jax: 0.10.0
libtpu: 0.0.40
codegen_flags: <defaults>
</compile_context>

<pallas_src>
import functools

import jax
import jax.numpy as jnp
from jax.experimental import pallas as pl
from jax.experimental.pallas import tpu as pltpu

EPS = 1e-06


def _fast_recip(a):
    # EUP approximate reciprocal + one Newton refinement step.  The Newton step is
    # two cheap VPU ops on the reduced (C, TN) plane and restores ~f32 accuracy.
    r = pl.reciprocal(a, approx=True)
    return r * (2.0 - a * r)


def _vn_softplus_kernel(x_ref, w_ref, o_ref, *, negative_slope):
    # x_ref / o_ref blocks: (3, C, TN)  (batch dim squeezed out by the BlockSpec)
    # w_ref: (Cd, C) with Cd == C (per-channel direction) or Cd == 1 (shared).
    w = w_ref[...].astype(jnp.float32)

    x0 = x_ref[0].astype(jnp.float32)  # (C, TN)
    x1 = x_ref[1].astype(jnp.float32)
    x2 = x_ref[2].astype(jnp.float32)

    # Channel mix d_v = W @ x_v : three clean 2-D MXU matmuls.
    d0 = jnp.dot(w, x0, preferred_element_type=jnp.float32)  # (Cd, TN)
    d1 = jnp.dot(w, x1, preferred_element_type=jnp.float32)
    d2 = jnp.dot(w, x2, preferred_element_type=jnp.float32)

    # 3-vector reductions: three VPU FMAs each, no cross-sublane work.
    # (Broadcasting over the channel axis handles the shared Cd == 1 case.)
    dotprod = x0 * d0 + x1 * d1 + x2 * d2          # (C, TN)
    x_nsq = x0 * x0 + x1 * x1 + x2 * x2            # (C, TN)
    d_nsq = d0 * d0 + d1 * d1 + d2 * d2            # (Cd, TN)

    # mask = cos(acos(t)/2)^2 == (1 + t)/2  with  t = <x,d> / (|x||d| + EPS).
    t = dotprod * _fast_recip(jnp.sqrt(x_nsq * d_nsq) + EPS)

    # out = ns*x + (1-ns)*( mask*x + (1-mask)*(x - <x,d>/(|d|^2+EPS)*d) )
    #     = x - (1-ns)*(1-mask) * <x,d>/(|d|^2+EPS) * d
    coef = (0.5 * (1.0 - negative_slope)) * (1.0 - t) * (
        dotprod * _fast_recip(d_nsq + EPS)
    )                                               # (C, TN)

    o_ref[0] = (x0 - coef * d0).astype(o_ref.dtype)
    o_ref[1] = (x1 - coef * d1).astype(o_ref.dtype)
    o_ref[2] = (x2 - coef * d2).astype(o_ref.dtype)


def _pick_lane_block(n, target):
    """Largest multiple of 128 that divides n and is <= target (or full n)."""
    if n % 128 != 0:
        return n  # full-extent last dim is always a legal block
    tn = max(128, min(target - target % 128, n))
    while n % tn != 0:
        tn -= 128
    return tn


def vn_softplus(x, w, *, negative_slope=0.0, lane_block=1024, vmem_limit_bytes=None):
    """x: [B, C, 3, N], w: [Cd, C] (Cd = C or 1).  Returns [B, C, 3, N]."""
    B, C, V, N = x.shape
    Cd, Cw = w.shape
    assert V == 3 and Cw == C and Cd in (1, C)

    tn = _pick_lane_block(N, lane_block)
    grid = (B, N // tn)

    # Move the 3-vector axis off the sublane axis: [B, C, 3, N] -> [B, 3, C, N].
    xt = jnp.transpose(x, (0, 2, 1, 3))

    kernel = functools.partial(
        _vn_softplus_kernel, negative_slope=float(negative_slope)
    )

    out_t = pl.pallas_call(
        kernel,
        out_shape=jax.ShapeDtypeStruct((B, 3, C, N), x.dtype),
        grid_spec=pltpu.PrefetchScalarGridSpec(
            num_scalar_prefetch=0,
            grid=grid,
            in_specs=[
                # Batch dim squeezed (None) -> kernel sees a (3, C, TN) block.
                pl.BlockSpec((None, 3, C, tn), lambda b, n: (b, 0, 0, n)),
                # Constant block index -> W stays resident in VMEM across steps.
                pl.BlockSpec((Cd, C), lambda b, n: (0, 0)),
            ],
            out_specs=pl.BlockSpec((None, 3, C, tn), lambda b, n: (b, 0, 0, n)),
        ),
        compiler_params=pltpu.CompilerParams(
            # Both grid axes are independent -> shards across the 2 TCs on v7x.
            dimension_semantics=("parallel", "parallel"),
            # Per-step footprint (in+out double-buffered) stays well under the
            # default scoped VMEM for lane_block <= ~2048; raise only if you
            # crank lane_block on v6e (128 MiB VMEM).
            vmem_limit_bytes=vmem_limit_bytes,
        ),
    )(xt, w)

    return jnp.transpose(out_t, (0, 2, 1, 3))


def vn_softplus_ref(x, w, *, negative_slope=0.0):
    """Pure-JAX reference matching the PyTorch VNSoftplus forward."""
    d = jnp.einsum("jc,bcvn->bjvn", w, x)
    dotprod = jnp.sum(x * d, axis=2, keepdims=True)
    x_norm = jnp.sqrt(jnp.sum(x * x, axis=2, keepdims=True))
    d_norm = jnp.sqrt(jnp.sum(d * d, axis=2, keepdims=True))
    ratio = dotprod / (x_norm * d_norm + EPS)
    # clip guards fp rounding past +/-1 (a mathematical no-op by Cauchy-Schwarz)
    angle = jnp.arccos(jnp.clip(ratio, -1.0, 1.0))
    mask = jnp.cos(angle / 2.0) ** 2
    d_norm_sq = jnp.sum(d * d, axis=2, keepdims=True)
    return negative_slope * x + (1 - negative_slope) * (
        mask * x + (1 - mask) * (x - dotprod / (d_norm_sq + EPS) * d)
    )


if __name__ == "__main__":
    # Small shapes consistent with the module: x is [B, N_feat, 3, N_samples].
    B, C, V, N = 2, 8, 3, 512
    negative_slope = 0.0  # VNSoftplus default

    key = jax.random.PRNGKey(0)
    kx, kw, kws = jax.random.split(key, 3)

    x = jax.random.normal(kx, (B, C, V, N), dtype=jnp.float32)

    # nn.Linear(C, C, bias=False) default init: U(-1/sqrt(C), 1/sqrt(C)).
    bound = 1.0 / jnp.sqrt(jnp.float32(C))
    w = jax.random.uniform(kw, (C, C), jnp.float32, -bound, bound)       # per-channel
    w_shared = jax.random.uniform(kws, (1, C), jnp.float32, -bound, bound)  # shared dir

    # lane_block=128 so the small example exercises the N-tiling grid axis (grid (2,4)).
    out = jax.block_until_ready(
        vn_softplus(x, w, negative_slope=negative_slope, lane_block=128)
    )
    ref = vn_softplus_ref(x, w, negative_slope=negative_slope)
    assert out.shape == (B, C, V, N)
    # Tolerance covers the EUP approx-reciprocal (+ Newton step) vs exact division.
    assert jnp.allclose(out, ref, atol=1e-3, rtol=1e-3), "mismatch vs reference"

    # share_nonlinearity=True path (Cd = 1, direction broadcast over channels).
    out_s = jax.block_until_ready(
        vn_softplus(x, w_shared, negative_slope=negative_slope, lane_block=128)
    )
    ref_s = vn_softplus_ref(x, w_shared, negative_slope=negative_slope)
    assert jnp.allclose(out_s, ref_s, atol=1e-3, rtol=1e-3), "mismatch (shared dir)"

    print("KERNEL_OK")
</pallas_src>

<mosaic_0001>
module attributes {stable_mosaic.version = 11 : i64} {
  func.func @_vn_softplus_kernel(%arg0: i32, %arg1: i32, %arg2: memref<1x3x8x128xf32, #tpu.memory_space<vmem>>, %arg3: memref<8x8xf32, #tpu.memory_space<vmem>>, %arg4: memref<1x3x8x128xf32, #tpu.memory_space<vmem>>) attributes {dimension_semantics = [#tpu.dimension_semantics<parallel>, #tpu.dimension_semantics<parallel>], iteration_bounds = array<i64: 2, 4>, scalar_prefetch = 0 : i64, scratch_operands = 0 : i64, tpu.core_type = #tpu.core_type<tc>, window_params = [{transform_indices = @transform_0, window_bounds = array<i64: 1, 3, 8, 128>}, {pipeline_mode = #tpu.pipeline_mode<synchronous>, transform_indices = @transform_1, window_bounds = array<i64: 8, 8>}, {transform_indices = @transform_2, window_bounds = array<i64: 1, 3, 8, 128>}]} {
    %c0 = arith.constant 0 : index
    %c0_0 = arith.constant 0 : index
    %0 = vector.load %arg3[%c0, %c0_0] : memref<8x8xf32, #tpu.memory_space<vmem>>, vector<8x8xf32>
    %c0_1 = arith.constant 0 : index
    %c0_2 = arith.constant 0 : index
    %c0_3 = arith.constant 0 : index
    %c0_4 = arith.constant 0 : index
    %1 = vector.load %arg2[%c0_1, %c0_2, %c0_3, %c0_4] : memref<1x3x8x128xf32, #tpu.memory_space<vmem>>, vector<1x1x8x128xf32>
    %2 = vector.shape_cast %1 : vector<1x1x8x128xf32> to vector<8x128xf32>
    %c0_5 = arith.constant 0 : index
    %c1 = arith.constant 1 : index
    %c0_6 = arith.constant 0 : index
    %c0_7 = arith.constant 0 : index
    %3 = vector.load %arg2[%c0_5, %c1, %c0_6, %c0_7] : memref<1x3x8x128xf32, #tpu.memory_space<vmem>>, vector<1x1x8x128xf32>
    %4 = vector.shape_cast %3 : vector<1x1x8x128xf32> to vector<8x128xf32>
    %c0_8 = arith.constant 0 : index
    %c2 = arith.constant 2 : index
    %c0_9 = arith.constant 0 : index
    %c0_10 = arith.constant 0 : index
    %5 = vector.load %arg2[%c0_8, %c2, %c0_9, %c0_10] : memref<1x3x8x128xf32, #tpu.memory_space<vmem>>, vector<1x1x8x128xf32>
    %6 = vector.shape_cast %5 : vector<1x1x8x128xf32> to vector<8x128xf32>
    %cst = arith.constant dense<0.000000e+00> : vector<8x128xf32>
    %7 = tpu.matmul %0, %2, %cst {dimension_numbers = #tpu.dot_dimension_numbers<[1], [0], [0], [1], [0, 0, 1, 1], [], []>} : vector<8x8xf32>, vector<8x128xf32>, vector<8x128xf32> -> vector<8x128xf32>
    %cst_11 = arith.constant dense<0.000000e+00> : vector<8x128xf32>
    %8 = tpu.matmul %0, %4, %cst_11 {dimension_numbers = #tpu.dot_dimension_numbers<[1], [0], [0], [1], [0, 0, 1, 1], [], []>} : vector<8x8xf32>, vector<8x128xf32>, vector<8x128xf32> -> vector<8x128xf32>
    %cst_12 = arith.constant dense<0.000000e+00> : vector<8x128xf32>
    %9 = tpu.matmul %0, %6, %cst_12 {dimension_numbers = #tpu.dot_dimension_numbers<[1], [0], [0], [1], [0, 0, 1, 1], [], []>} : vector<8x8xf32>, vector<8x128xf32>, vector<8x128xf32> -> vector<8x128xf32>
    %10 = arith.mulf %2, %7 : vector<8x128xf32>
    %11 = arith.mulf %4, %8 : vector<8x128xf32>
    %12 = arith.addf %10, %11 : vector<8x128xf32>
    %13 = arith.mulf %6, %9 : vector<8x128xf32>
    %14 = arith.addf %12, %13 : vector<8x128xf32>
    %15 = arith.mulf %2, %2 : vector<8x128xf32>
    %16 = arith.mulf %4, %4 : vector<8x128xf32>
    %17 = arith.addf %15, %16 : vector<8x128xf32>
    %18 = arith.mulf %6, %6 : vector<8x128xf32>
    %19 = arith.addf %17, %18 : vector<8x128xf32>
    %20 = arith.mulf %7, %7 : vector<8x128xf32>
    %21 = arith.mulf %8, %8 : vector<8x128xf32>
    %22 = arith.addf %20, %21 : vector<8x128xf32>
    %23 = arith.mulf %9, %9 : vector<8x128xf32>
    %24 = arith.addf %22, %23 : vector<8x128xf32>
    %25 = arith.mulf %19, %24 : vector<8x128xf32>
    %26 = math.sqrt %25 : vector<8x128xf32>
    %cst_13 = arith.constant 9.99999997E-7 : f32
    %27 = vector.broadcast %cst_13 : f32 to vector<8x128xf32>
    %28 = arith.addf %26, %27 : vector<8x128xf32>
    %29 = tpu.reciprocal %28 {approx = true} : vector<8x128xf32> -> vector<8x128xf32>
    %30 = arith.mulf %28, %29 : vector<8x128xf32>
    %cst_14 = arith.constant 2.000000e+00 : f32
    %31 = vector.broadcast %cst_14 : f32 to vector<8x128xf32>
    %32 = arith.subf %31, %30 : vector<8x128xf32>
    %33 = arith.mulf %29, %32 : vector<8x128xf32>
    %34 = arith.mulf %14, %33 : vector<8x128xf32>
    %cst_15 = arith.constant 1.000000e+00 : f32
    %35 = vector.broadcast %cst_15 : f32 to vector<8x128xf32>
    %36 = arith.subf %35, %34 : vector<8x128xf32>
    %cst_16 = arith.constant 5.000000e-01 : f32
    %37 = vector.broadcast %cst_16 : f32 to vector<8x128xf32>
    %38 = arith.mulf %37, %36 : vector<8x128xf32>
    %cst_17 = arith.constant 9.99999997E-7 : f32
    %39 = vector.broadcast %cst_17 : f32 to vector<8x128xf32>
    %40 = arith.addf %24, %39 : vector<8x128xf32>
    %41 = tpu.reciprocal %40 {approx = true} : vector<8x128xf32> -> vector<8x128xf32>
    %42 = arith.mulf %40, %41 : vector<8x128xf32>
    %cst_18 = arith.constant 2.000000e+00 : f32
    %43 = vector.broadcast %cst_18 : f32 to vector<8x128xf32>
    %44 = arith.subf %43, %42 : vector<8x128xf32>
    %45 = arith.mulf %41, %44 : vector<8x128xf32>
    %46 = arith.mulf %14, %45 : vector<8x128xf32>
    %47 = arith.mulf %38, %46 : vector<8x128xf32>
    %48 = arith.mulf %47, %7 : vector<8x128xf32>
    %49 = arith.subf %2, %48 : vector<8x128xf32>
    %c0_19 = arith.constant 0 : index
    %c0_20 = arith.constant 0 : index
    %c0_21 = arith.constant 0 : index
    %c0_22 = arith.constant 0 : index
    %50 = vector.load %arg4[%c0_19, %c0_20, %c0_21, %c0_22] : memref<1x3x8x128xf32, #tpu.memory_space<vmem>>, vector<1x1x8x128xf32>
    %51 = vector.shape_cast %50 : vector<1x1x8x128xf32> to vector<8x128xf32>
    %52 = vector.shape_cast %49 : vector<8x128xf32> to vector<1x1x8x128xf32>
    tpu.vector_store %arg4[%c0_19, %c0_20, %c0_21, %c0_22], %52 {strides = array<i32>} : memref<1x3x8x128xf32, #tpu.memory_space<vmem>>, vector<1x1x8x128xf32>,
    %53 = arith.mulf %47, %8 : vector<8x128xf32>
    %54 = arith.subf %4, %53 : vector<8x128xf32>
    %c0_23 = arith.constant 0 : index
    %c1_24 = arith.constant 1 : index
    %c0_25 = arith.constant 0 : index
    %c0_26 = arith.constant 0 : index
    %55 = vector.load %arg4[%c0_23, %c1_24, %c0_25, %c0_26] : memref<1x3x8x128xf32, #tpu.memory_space<vmem>>, vector<1x1x8x128xf32>
    %56 = vector.shape_cast %55 : vector<1x1x8x128xf32> to vector<8x128xf32>
    %57 = vector.shape_cast %54 : vector<8x128xf32> to vector<1x1x8x128xf32>
    tpu.vector_store %arg4[%c0_23, %c1_24, %c0_25, %c0_26], %57 {strides = array<i32>} : memref<1x3x8x128xf32, #tpu.memory_space<vmem>>, vector<1x1x8x128xf32>,
    %58 = arith.mulf %47, %9 : vector<8x128xf32>
    %59 = arith.subf %6, %58 : vector<8x128xf32>
    %c0_27 = arith.constant 0 : index
    %c2_28 = arith.constant 2 : index
    %c0_29 = arith.constant 0 : index
    %c0_30 = arith.constant 0 : index
    %60 = vector.load %arg4[%c0_27, %c2_28, %c0_29, %c0_30] : memref<1x3x8x128xf32, #tpu.memory_space<vmem>>, vector<1x1x8x128xf32>
    %61 = vector.shape_cast %60 : vector<1x1x8x128xf32> to vector<8x128xf32>
    %62 = vector.shape_cast %59 : vector<8x128xf32> to vector<1x1x8x128xf32>
    tpu.vector_store %arg4[%c0_27, %c2_28, %c0_29, %c0_30], %62 {strides = array<i32>} : memref<1x3x8x128xf32, #tpu.memory_space<vmem>>, vector<1x1x8x128xf32>,
    return
  }
  func.func @transform_0(%arg0: i32, %arg1: i32) -> (i32, i32, i32, i32) {
    %c0_i32 = arith.constant 0 : i32
    %c0_i32_0 = arith.constant 0 : i32
    %c0_i32_1 = arith.constant 0 : i32
    return %arg0, %c0_i32, %c0_i32_0, %arg1 : i32, i32, i32, i32
  }
  func.func @transform_1(%arg0: i32, %arg1: i32) -> (i32, i32) {
    %c0_i32 = arith.constant 0 : i32
    %c0_i32_0 = arith.constant 0 : i32
    %c0_i32_1 = arith.constant 0 : i32
    return %c0_i32, %c0_i32_0 : i32, i32
  }
  func.func @transform_2(%arg0: i32, %arg1: i32) -> (i32, i32, i32, i32) {
    %c0_i32 = arith.constant 0 : i32
    %c0_i32_0 = arith.constant 0 : i32
    %c0_i32_1 = arith.constant 0 : i32
    return %arg0, %c0_i32, %c0_i32_0, %arg1 : i32, i32, i32, i32
  }
}

</mosaic_0001>

<llo_original>
// kernel: tpu_custom_call.1
$region0: #{tpu_custom_call.1}
  #allocation0 [shape = 'u32[]', space=smem, size = 0x4, offset = 0x4, fixed_abs, tag = 'smem constant byte address 0x4 - core index']
  #allocation1 [shape = 'u32[144,128]{1,0:T(1,128)}', space=vmem, size = 0x12000, scoped, tag = 'internal scratch']
  %s0 = inlined_call_operand.hbm [shape: f32[2,3,8,512], index: 0, kind: input, shape index: {}]
  %s1 = inlined_call_operand.hbm [shape: f32[8,8], index: 1, kind: input, shape index: {}]
  %s2 = inlined_call_operand.hbm [shape: f32[2,3,8,512], index: 2, kind: output, shape index: {}]
  %s3 = sld [smem:[#allocation0]]
  $region49: #{tpu_custom_call.1} parent=0
    _
  %s5 = ssub.s32 1, %s3
  %s6 = scalar_select 0, %s5, %s3
  $region1: #{tpu_custom_call.1} parent=0
    #allocation2 [shape = 'u8[24576]{0}', space=vmem, size = 0x6000, scoped, tag = 'input window, operand 0']
    #allocation3 [shape = 's32[2]{0}', space=sflag, size = 0x8, scoped, tag = 'scoped memory for tpu_custom_call.1']
    #allocation4 [shape = 's32[2]{0}', space=sflag, size = 0x8, scoped, tag = 'scoped memory for tpu_custom_call.1']
    #allocation5 [shape = 'u8[4096]{0}', space=vmem, size = 0x1000, scoped, tag = 'input window, operand 1, single buffered']
    #allocation6 [shape = 's32[1]{0}', space=sflag, size = 0x4, scoped, tag = 'scoped memory for tpu_custom_call.1']
    #allocation7 [shape = 'u8[24576]{0}', space=vmem, size = 0x6000, scoped, tag = 'output window, operand 0']
    %7 = vsyncpa [#allocation3], 0
    %s8 = scalar_lea.sflag [#allocation3], 1
    %9 = vsyncpa %s8, 0
    %10 = vsyncpa [#allocation6], 0
    %11 = vsyncpa [#allocation4], 0
    %s12 = scalar_lea.sflag [#allocation4], 1
    %13 = vsyncpa %s12, 0
    loop: start=0, step=1, limit=10
    $region2: #{tpu_custom_call.1} parent=1 // loop_pre_header
      _
    $region3: #{tpu_custom_call.1} parent=1 // loop_header
      %s15 = sphi 0, %s19
      %p16 = scmp.ge.s32.totalorder %s15, 10
      %s22 = sphi 0, %s34
      %s23 = sphi 0, %s30
      %s24 = sphi 0, %s22
      %s25 = sphi 0, %s23
      %s26 = sphi 0, %s24
      %s27 = sphi 0, %s25
      %s39 = sphi 0, %s41
      %s42 = sphi 0, %s39
      %s43 = sphi 0, %s42
      %s59 = sphi 0, %s43
      %s63 = sphi 0, %s63
      %s65 = sphi 0, %s63
      %s66 = sphi 0, %s65
      %s80 = sphi 0, %s66
      %s88 = sphi 0, %s90
      %s91 = sphi 0, %s88
      %s92 = sphi 0, %s91
      %s108 = sphi 0, %s92
    $region4: #{tpu_custom_call.1} parent=1 // loop_header_branch
      %18 = sbr.rel (%p16) target = $region8
    $region5: #{tpu_custom_call.1} parent=1 // loop_body
      %s20 = ssub.s32 %s15, 1
      %s21 = ssub.s32 %s15, 2
      %s28 = sadd.s32 1, %s23
      %p29 = scmp.ge.s32.totalorder %s28, 4
      %s30 = scalar_select %p29, 0, %s28
      %s31 = sadd.s32 1, %s22
      %s32 = scalar_select %p29, %s31, %s22
      %p33 = scmp.ge.s32.totalorder %s32, 2
      %s34 = scalar_select %p33, 0, %s32
      %s35 = ssub.s32 %s22, %s34
      %s36 = ssub.s32 %s23, %s30
      %s37 = sor.u32 %s35, %s36
      %p38 = scmp.eq.s32.totalorder %s37, 0
      %s40 = sadd.s32 %s39, 1
      %s41 = scalar_select %p38, %s39, %s40
      %p44 = pneg %p38
      %p45 = scmp.eq.s32.totalorder %s15, 7
      %p46 = por %p44, %p45
      %p47 = scmp.ne.s32.totalorder %s39, %s42
      %p48 = scmp.eq.s32.totalorder %s15, 0
      %p49 = por %p47, %p48
      %p50 = scmp.ne.s32.totalorder %s39, %s42
      %p51 = scmp.eq.s32.totalorder %s20, 7
      %p52 = por %p50, %p51
      %p53 = scmp.ne.s32.totalorder %s42, %s43
      %p54 = scmp.eq.s32.totalorder %s20, 0
      %p55 = por %p53, %p54
      %p56 = scmp.ne.s32.totalorder %s42, %s43
      %p57 = scmp.eq.s32.totalorder %s21, 7
      %p58 = por %p56, %p57
      %p60 = scmp.ne.s32.totalorder %s43, %s59
      %p61 = scmp.eq.s32.totalorder %s21, 0
      %p62 = por %p60, %p61
      %s64 = sadd.s32 %s63, 1
      %p67 = scmp.eq.s32.totalorder %s15, 7
      %p68 = scmp.ne.s32.totalorder %s63, %s65
      %p69 = scmp.eq.s32.totalorder %s15, 0
      %p70 = por %p68, %p69
      %p71 = scmp.ne.s32.totalorder %s63, %s65
      %p72 = scmp.eq.s32.totalorder %s20, 7
      %p73 = por %p71, %p72
      %p74 = scmp.ne.s32.totalorder %s65, %s66
      %p75 = scmp.eq.s32.totalorder %s20, 0
      %p76 = por %p74, %p75
      %p77 = scmp.ne.s32.totalorder %s65, %s66
      %p78 = scmp.eq.s32.totalorder %s21, 7
      %p79 = por %p77, %p78
      %p81 = scmp.ne.s32.totalorder %s66, %s80
      %p82 = scmp.eq.s32.totalorder %s21, 0
      %p83 = por %p81, %p82
      %s84 = ssub.s32 %s22, %s34
      %s85 = ssub.s32 %s23, %s30
      %s86 = sor.u32 %s84, %s85
      %p87 = scmp.eq.s32.totalorder %s86, 0
      %s89 = sadd.s32 %s88, 1
      %s90 = scalar_select %p87, %s88, %s89
      %p93 = pneg %p87
      %p94 = scmp.eq.s32.totalorder %s15, 7
      %p95 = por %p93, %p94
      %p96 = scmp.ne.s32.totalorder %s88, %s91
      %p97 = scmp.eq.s32.totalorder %s15, 0
      %p98 = por %p96, %p97
      %p99 = scmp.ne.s32.totalorder %s88, %s91
      %p100 = scmp.eq.s32.totalorder %s20, 7
      %p101 = por %p99, %p100
      %p102 = scmp.ne.s32.totalorder %s91, %s92
      %p103 = scmp.eq.s32.totalorder %s20, 0
      %p104 = por %p102, %p103
      %p105 = scmp.ne.s32.totalorder %s91, %s92
      %p106 = scmp.eq.s32.totalorder %s21, 7
      %p107 = por %p105, %p106
      %p109 = scmp.ne.s32.totalorder %s92, %s108
      %p110 = scmp.eq.s32.totalorder %s21, 0
      %p111 = por %p109, %p110
      %p112 = scmp.le.s32.totalorder 1, %s15
      %p113 = scmp.lt.s32.totalorder %s15, 9
      %p114 = pnand %p112, %p113
      %p115 = pneg %p114
      // Predicated region
      $region9: #{tpu_custom_call.1} parent=5 // pred_check
        _
      $region10: #{tpu_custom_call.1} parent=5 // pred_check_branch
        %117 = sbr.rel (%p114) target = $region12
      $region11: #{tpu_custom_call.1} parent=5 // pred_region
        %s118 = ssub.s32 %s15, 1
        // Predicated region
        $region13: #{tpu_custom_call.1} parent=11 // pred_check
          %p119 = pneg %p76
        $region14: #{tpu_custom_call.1} parent=11 // pred_check_branch
          %121 = sbr.rel (%p119) target = $region16
        $region15: #{tpu_custom_call.1} parent=11 // pred_region
          %s123 = ssub.s32 128, 128
          %124 = vsyncadd [#allocation6], %s123
          %s126 = sshll.u32 [#allocation5], 4
          %s127 = int_to_ptr.vmem [resolvable:$true] %s126
          %129 = dma.hbm_to_vmem [thread:$0]  %s1, 128, %s127, [#allocation6]
        $region16: #{tpu_custom_call.1} parent=11 // pred_fallthru
          _
      $region12: #{tpu_custom_call.1} parent=5 // pred_fallthru
        _
      %p130 = scmp.lt.s32.totalorder %s15, 8
      // Predicated region
      $region17: #{tpu_custom_call.1} parent=5 // pred_check
        %p131 = pneg %p130
      $region18: #{tpu_custom_call.1} parent=5 // pred_check_branch
        %133 = sbr.rel (%p131) target = $region20
      $region19: #{tpu_custom_call.1} parent=5 // pred_region
        // Predicated region
        $region21: #{tpu_custom_call.1} parent=19 // pred_check
          %p134 = pneg %p49
        $region22: #{tpu_custom_call.1} parent=19 // pred_check_branch
          %136 = sbr.rel (%p134) target = $region24
        $region23: #{tpu_custom_call.1} parent=19 // pred_region
          %s137 = sand.u32 %s39, 1
          %s138 = scalar_lea.sflag [#allocation3], %s137
          %s139 = sand.u32 %s39, 1
          %s140 = smul.addr %s139, 24
          %s141 = scalar_lea.vmem [#allocation2], %s140
          %s143 = ssub.s32 384, 384
          %144 = vsyncadd %s138, %s143
          %s145 = smul.addr %s22, 12
          %s146 = sadd.s32 %s23, %s145
          %s147 = smul.addr %s146, 128
          %s148 = scalar_lea.hbm %s0, %s147
          %s149 = sshll.u32 %s141, 4
          %s150 = int_to_ptr.vmem [resolvable:$true] %s149
          %155 = dma.hbm_to_vmem [thread:$0]  %s148, 384, %s150, %s138, 512, 128, 8
        $region24: #{tpu_custom_call.1} parent=19 // pred_fallthru
          _
      $region20: #{tpu_custom_call.1} parent=5 // pred_fallthru
        _
      %p156 = scmp.le.s32.totalorder 1, %s15
      %p157 = scmp.lt.s32.totalorder %s15, 9
      %p158 = pnand %p156, %p157
      %p159 = pneg %p158
      // Predicated region
      $region25: #{tpu_custom_call.1} parent=5 // pred_check
        _
      $region26: #{tpu_custom_call.1} parent=5 // pred_check_branch
        %161 = sbr.rel (%p158) target = $region28
      $region27: #{tpu_custom_call.1} parent=5 // pred_region
        %s162 = ssub.s32 %s15, 1
        %s163 = sand.u32 %s42, 1
        %s164 = scalar_lea.sflag [#allocation3], %s163
        %s165 = sand.u32 %s42, 1
        %s166 = smul.addr %s165, 24
        %s167 = scalar_lea.vmem [#allocation2], %s166
        // Predicated region
        $region29: #{tpu_custom_call.1} parent=27 // pred_check
          %p168 = pneg %p55
        $region30: #{tpu_custom_call.1} parent=27 // pred_check_branch
          %170 = sbr.rel (%p168) target = $region32
        $region31: #{tpu_custom_call.1} parent=27 // pred_region
          %171 = dma.done %s164, 384
        $region32: #{tpu_custom_call.1} parent=27 // pred_fallthru
          _
        // Predicated region
        $region33: #{tpu_custom_call.1} parent=27 // pred_check
          %p172 = pneg %p76
        $region34: #{tpu_custom_call.1} parent=27 // pred_check_branch
          %174 = sbr.rel (%p172) target = $region36
        $region35: #{tpu_custom_call.1} parent=27 // pred_region
          %175 = dma.done [#allocation6], 128
        $region36: #{tpu_custom_call.1} parent=27 // pred_fallthru
          _
        %s176 = sand.u32 %s42, 1
        %s177 = scalar_lea.sflag [#allocation3], %s176
        %s178 = sand.u32 %s42, 1
        %s179 = smul.addr %s178, 24
        %s180 = scalar_lea.vmem [#allocation2], %s179
        %p181 = pneg %p55
        %p182 = pneg %p52
        %p183 = pneg %p76
        %p184 = pneg %p73
        %p185 = pneg %p104
        %p186 = pneg %p101
        %s187 = sand.u32 %s91, 1
        %s188 = scalar_lea.sflag [#allocation4], %s187
        %s189 = sand.u32 %s91, 1
        %s190 = smul.addr %s189, 24
        %s191 = scalar_lea.vmem [#allocation7], %s190
        %v192 = vld [vmem:[#allocation5] sm:$0xff]
        %v193 = vld [vmem:[%s167] sm:$0xff]
        %s194 = scalar_lea.vmem %s167, 8 [#allocation2]
        %v195 = vld [vmem:[%s194] sm:$0xff]
        %s196 = scalar_lea.vmem %s167, 16 [#allocation2]
        %v197 = vld [vmem:[%s196] sm:$0xff]
        %vm198 = vcmask 64512
        %v200 = vsel %vm198, %v192, 0
        %202 = vmatprep.subr.mxu0 0.0
        %203 = vmatpush1.msra.mxu0 %v193
        %204 = vmatprep.subr.mxu0 0.0
        %205 = vmatpush1.msra.mxu0 0.0
        %206 = vmatprep.subr.mxu0 0.0
        %207 = vmatpush1.msra.mxu0 0.0
        %208 = vmatprep.subr.mxu0 0.0
        %209 = vmatpush1.msra.mxu0 0.0
        %210 = vmatprep.subr.mxu0 0.0
        %211 = vmatpush1.msra.mxu0 0.0
        %212 = vmatprep.subr.mxu0 0.0
        %213 = vmatpush1.msra.mxu0 0.0
        %214 = vmatprep.subr.mxu0 0.0
        %215 = vmatpush1.msra.mxu0 0.0
        %216 = vmatprep.subr.mxu0 0.0
        %217 = vmatpush1.msra.mxu0 0.0
        %218 = vmatprep.subr.mxu0 0.0
        %219 = vmatpush1.msra.mxu0 0.0
        %220 = vmatprep.subr.mxu0 0.0
        %221 = vmatpush1.msra.mxu0 0.0
        %222 = vmatprep.subr.mxu0 0.0
        %223 = vmatpush1.msra.mxu0 0.0
        %224 = vmatprep.subr.mxu0 0.0
        %225 = vmatpush1.msra.mxu0 0.0
        %226 = vmatprep.subr.mxu0 0.0
        %227 = vmatpush1.msra.mxu0 0.0
        %228 = vmatprep.subr.mxu0 0.0
        %229 = vmatpush1.msra.mxu0 0.0
        %230 = vmatprep.subr.mxu0 0.0
        %231 = vmatpush1.msra.mxu0 0.0
        %232 = vmatprep.subr.mxu0 0.0
        %233 = vmatpush1.msra.mxu0 0.0
        %234 = vmatprep.subr.mxu0 0.0
        %235 = vmatpush1.msra.mxu0 0.0
        %236 = vmatprep.subr.mxu0 0.0
        %237 = vmatpush1.msra.mxu0 0.0
        %238 = vmatprep.subr.mxu0 0.0
        %239 = vmatpush1.msra.mxu0 0.0
        %240 = vmatprep.subr.mxu0 0.0
        %241 = vmatpush1.msra.mxu0 0.0
        %242 = vmatprep.subr.mxu0 0.0
        %243 = vmatpush1.msra.mxu0 0.0
        %244 = vmatprep.subr.mxu0 0.0
        %245 = vmatpush1.msra.mxu0 0.0
        %246 = vmatprep.subr.mxu0 0.0
        %247 = vmatpush1.msra.mxu0 0.0
        %248 = vmatprep.subr.mxu0 0.0
        %249 = vmatpush1.msra.mxu0 0.0
        %250 = vmatprep.subr.mxu0 0.0
        %251 = vmatpush1.msra.mxu0 0.0
        %252 = vmatprep.subr.mxu0 0.0
        %253 = vmatpush1.msra.mxu0 0.0
        %254 = vmatprep.subr.mxu0 0.0
        %255 = vmatpush1.msra.mxu0 0.0
        %256 = vmatprep.subr.mxu0 0.0
        %257 = vmatpush1.msra.mxu0 0.0
        %258 = vmatprep.subr.mxu0 0.0
        %259 = vmatpush1.msra.mxu0 0.0
        %260 = vmatprep.subr.mxu0 0.0
        %261 = vmatpush1.msra.mxu0 0.0
        %262 = vmatprep.subr.mxu0 0.0
        %263 = vmatpush1.msra.mxu0 0.0
        %264 = vmatprep.subr.mxu0 0.0
        %265 = vmatpush1.msra.mxu0 0.0
        %266 = vmatprep.mubr.f32.mxu0 0.0
        %267 = vmatmul.mubr.f32.gmra.mrb[0].mxu0 %v200
        %v268 = vpop.f32.mrb[0].mxu0
        %v269 = vadd.f32 0.0, %v268
        %v270 = vpop.f32.mrb[0].mxu0
        %271 = vdwg.mxu0
        %272 = vmatprep.subr.mxu0 0.0
        %273 = vmatpush1.msra.mxu0 %v195
        %274 = vmatprep.subr.mxu0 0.0
        %275 = vmatpush1.msra.mxu0 0.0
        %276 = vmatprep.subr.mxu0 0.0
        %277 = vmatpush1.msra.mxu0 0.0
        %278 = vmatprep.subr.mxu0 0.0
        %279 = vmatpush1.msra.mxu0 0.0
        %280 = vmatprep.subr.mxu0 0.0
        %281 = vmatpush1.msra.mxu0 0.0
        %282 = vmatprep.subr.mxu0 0.0
        %283 = vmatpush1.msra.mxu0 0.0
        %284 = vmatprep.subr.mxu0 0.0
        %285 = vmatpush1.msra.mxu0 0.0
        %286 = vmatprep.subr.mxu0 0.0
        %287 = vmatpush1.msra.mxu0 0.0
        %288 = vmatprep.subr.mxu0 0.0
        %289 = vmatpush1.msra.mxu0 0.0
        %290 = vmatprep.subr.mxu0 0.0
        %291 = vmatpush1.msra.mxu0 0.0
        %292 = vmatprep.subr.mxu0 0.0
        %293 = vmatpush1.msra.mxu0 0.0
        %294 = vmatprep.subr.mxu0 0.0
        %295 = vmatpush1.msra.mxu0 0.0
        %296 = vmatprep.subr.mxu0 0.0
        %297 = vmatpush1.msra.mxu0 0.0
        %298 = vmatprep.subr.mxu0 0.0
        %299 = vmatpush1.msra.mxu0 0.0
        %300 = vmatprep.subr.mxu0 0.0
        %301 = vmatpush1.msra.mxu0 0.0
        %302 = vmatprep.subr.mxu0 0.0
        %303 = vmatpush1.msra.mxu0 0.0
        %304 = vmatprep.subr.mxu0 0.0
        %305 = vmatpush1.msra.mxu0 0.0
        %306 = vmatprep.subr.mxu0 0.0
        %307 = vmatpush1.msra.mxu0 0.0
        %308 = vmatprep.subr.mxu0 0.0
        %309 = vmatpush1.msra.mxu0 0.0
        %310 = vmatprep.subr.mxu0 0.0
        %311 = vmatpush1.msra.mxu0 0.0
        %312 = vmatprep.subr.mxu0 0.0
        %313 = vmatpush1.msra.mxu0 0.0
        %314 = vmatprep.subr.mxu0 0.0
        %315 = vmatpush1.msra.mxu0 0.0
        %316 = vmatprep.subr.mxu0 0.0
        %317 = vmatpush1.msra.mxu0 0.0
        %318 = vmatprep.subr.mxu0 0.0
        %319 = vmatpush1.msra.mxu0 0.0
        %320 = vmatprep.subr.mxu0 0.0
        %321 = vmatpush1.msra.mxu0 0.0
        %322 = vmatprep.subr.mxu0 0.0
        %323 = vmatpush1.msra.mxu0 0.0
        %324 = vmatprep.subr.mxu0 0.0
        %325 = vmatpush1.msra.mxu0 0.0
        %326 = vmatprep.subr.mxu0 0.0
        %327 = vmatpush1.msra.mxu0 0.0
        %328 = vmatprep.subr.mxu0 0.0
        %329 = vmatpush1.msra.mxu0 0.0
        %330 = vmatprep.subr.mxu0 0.0
        %331 = vmatpush1.msra.mxu0 0.0
        %332 = vmatprep.subr.mxu0 0.0
        %333 = vmatpush1.msra.mxu0 0.0
        %334 = vmatprep.subr.mxu0 0.0
        %335 = vmatpush1.msra.mxu0 0.0
        %336 = vmatprep.mubr.f32.mxu0 0.0
        %337 = vmatmul.mubr.f32.gmra.mrb[0].mxu0 %v200
        %v338 = vpop.f32.mrb[0].mxu0
        %v339 = vadd.f32 0.0, %v338
        %v340 = vpop.f32.mrb[0].mxu0
        %341 = vdwg.mxu0
        %342 = vmatprep.subr.mxu0 0.0
        %343 = vmatpush1.msra.mxu0 %v197
        %344 = vmatprep.subr.mxu0 0.0
        %345 = vmatpush1.msra.mxu0 0.0
        %346 = vmatprep.subr.mxu0 0.0
        %347 = vmatpush1.msra.mxu0 0.0
        %348 = vmatprep.subr.mxu0 0.0
        %349 = vmatpush1.msra.mxu0 0.0
        %350 = vmatprep.subr.mxu0 0.0
        %351 = vmatpush1.msra.mxu0 0.0
        %352 = vmatprep.subr.mxu0 0.0
        %353 = vmatpush1.msra.mxu0 0.0
        %354 = vmatprep.subr.mxu0 0.0
        %355 = vmatpush1.msra.mxu0 0.0
        %356 = vmatprep.subr.mxu0 0.0
        %357 = vmatpush1.msra.mxu0 0.0
        %358 = vmatprep.subr.mxu0 0.0
        %359 = vmatpush1.msra.mxu0 0.0
        %360 = vmatprep.subr.mxu0 0.0
        %361 = vmatpush1.msra.mxu0 0.0
        %362 = vmatprep.subr.mxu0 0.0
        %363 = vmatpush1.msra.mxu0 0.0
        %364 = vmatprep.subr.mxu0 0.0
        %365 = vmatpush1.msra.mxu0 0.0
        %366 = vmatprep.subr.mxu0 0.0
        %367 = vmatpush1.msra.mxu0 0.0
        %368 = vmatprep.subr.mxu0 0.0
        %369 = vmatpush1.msra.mxu0 0.0
        %370 = vmatprep.subr.mxu0 0.0
        %371 = vmatpush1.msra.mxu0 0.0
        %372 = vmatprep.subr.mxu0 0.0
        %373 = vmatpush1.msra.mxu0 0.0
        %374 = vmatprep.subr.mxu0 0.0
        %375 = vmatpush1.msra.mxu0 0.0
        %376 = vmatprep.subr.mxu0 0.0
        %377 = vmatpush1.msra.mxu0 0.0
        %378 = vmatprep.subr.mxu0 0.0
        %379 = vmatpush1.msra.mxu0 0.0
        %380 = vmatprep.subr.mxu0 0.0
        %381 = vmatpush1.msra.mxu0 0.0
        %382 = vmatprep.subr.mxu0 0.0
        %383 = vmatpush1.msra.mxu0 0.0
        %384 = vmatprep.subr.mxu0 0.0
        %385 = vmatpush1.msra.mxu0 0.0
        %386 = vmatprep.subr.mxu0 0.0
        %387 = vmatpush1.msra.mxu0 0.0
        %388 = vmatprep.subr.mxu0 0.0
        %389 = vmatpush1.msra.mxu0 0.0
        %390 = vmatprep.subr.mxu0 0.0
        %391 = vmatpush1.msra.mxu0 0.0
        %392 = vmatprep.subr.mxu0 0.0
        %393 = vmatpush1.msra.mxu0 0.0
        %394 = vmatprep.subr.mxu0 0.0
        %395 = vmatpush1.msra.mxu0 0.0
        %396 = vmatprep.subr.mxu0 0.0
        %397 = vmatpush1.msra.mxu0 0.0
        %398 = vmatprep.subr.mxu0 0.0
        %399 = vmatpush1.msra.mxu0 0.0
        %400 = vmatprep.subr.mxu0 0.0
        %401 = vmatpush1.msra.mxu0 0.0
        %402 = vmatprep.subr.mxu0 0.0
        %403 = vmatpush1.msra.mxu0 0.0
        %404 = vmatprep.subr.mxu0 0.0
        %405 = vmatpush1.msra.mxu0 0.0
        %406 = vmatprep.mubr.f32.mxu0 0.0
        %407 = vmatmul.mubr.f32.gmra.mrb[0].mxu0 %v200
        %v408 = vpop.f32.mrb[0].mxu0
        %v409 = vadd.f32 0.0, %v408
        %v410 = vpop.f32.mrb[0].mxu0
        %411 = vdwg.mxu0
        %v412 = vmul.f32 %v193, %v269
        %v413 = vmul.f32 %v195, %v339
        %v414 = vadd.f32 %v412, %v413
        %v415 = vmul.f32 %v197, %v409
        %v416 = vadd.f32 %v414, %v415
        %v417 = vmul.f32 %v193, %v193
        %v418 = vmul.f32 %v195, %v195
        %v419 = vadd.f32 %v417, %v418
        %v420 = vmul.f32 %v197, %v197
        %v421 = vadd.f32 %v419, %v420
        %v422 = vmul.f32 %v269, %v269
        %v423 = vmul.f32 %v339, %v339
        %v424 = vadd.f32 %v422, %v423
        %v425 = vmul.f32 %v409, %v409
        %v426 = vadd.f32 %v424, %v425
        %v427 = vmul.f32 %v421, %v426
        %v428 = vrsqrt.pop %v427
        %v429 = vmul.f32 %v427, %v428
        %vm430 = vcmp.eq.f32.partialorder %v427, inf
        %v431 = vsel %vm430, %v427, %v429
        %vm432 = vcmp.eq.f32.partialorder %v427, 0.0
        %v433 = vand.u32 %v427, 2147483648
        %v434 = vsel %vm432, %v433, %v431
        %v435 = vadd.f32 %v434, 1e-06
        %v436 = vrcp.pop %v435
        %v437 = vmul.f32 %v435, %v436
        %v438 = vsub.f32 2.0, %v437
        %v439 = vmul.f32 %v436, %v438
        %v440 = vmul.f32 %v416, %v439
        %v441 = vsub.f32 1.0, %v440
        %v442 = vmul.f32 %v441, 0.5
        %v443 = vadd.f32 %v426, 1e-06
        %v444 = vrcp.pop %v443
        %v445 = vmul.f32 %v443, %v444
        %v446 = vsub.f32 2.0, %v445
        %v447 = vmul.f32 %v444, %v446
        %v448 = vmul.f32 %v416, %v447
        %v449 = vmul.f32 %v442, %v448
        %v450 = vmul.f32 %v449, %v269
        %v451 = vsub.f32 %v193, %v450
        %452 = vst [vmem:[%s191] sm:$0xff] %v451
        %v453 = vmul.f32 %v449, %v339
        %v454 = vsub.f32 %v195, %v453
        %s455 = scalar_lea.vmem %s191, 8 [#allocation7]
        %456 = vst [vmem:[%s455] sm:$0xff] %v454
        %v457 = vmul.f32 %v449, %v409
        %v458 = vsub.f32 %v197, %v457
        %s459 = scalar_lea.vmem %s191, 16 [#allocation7]
        %460 = vst [vmem:[%s459] sm:$0xff] %v458
        %s461 = sand.u32 %s91, 1
        %s462 = scalar_lea.sflag [#allocation4], %s461
        %s463 = sand.u32 %s91, 1
        %s464 = smul.addr %s463, 24
        %s465 = scalar_lea.vmem [#allocation7], %s464
        // Predicated region
        $region37: #{tpu_custom_call.1} parent=27 // pred_check
          %p466 = pneg %p101
        $region38: #{tpu_custom_call.1} parent=27 // pred_check_branch
          %468 = sbr.rel (%p466) target = $region40
        $region39: #{tpu_custom_call.1} parent=27 // pred_region
          %s470 = ssub.s32 384, 384
          %471 = vsyncadd %s462, %s470
          %s472 = smul.addr %s24, 12
          %s473 = sadd.s32 %s25, %s472
          %s474 = smul.addr %s473, 128
          %s475 = scalar_lea.hbm %s2, %s474
          %s476 = sshll.u32 %s465, 4
          %s477 = int_to_ptr.vmem [resolvable:$true] %s476
          %482 = dma.vmem_to_hbm [thread:$0]  %s477, 384, %s475, %s462, 128, 512, 8
        $region40: #{tpu_custom_call.1} parent=27 // pred_fallthru
          _
      $region28: #{tpu_custom_call.1} parent=5 // pred_fallthru
        _
      %p483 = scmp.le.s32.totalorder 2, %s15
      // Predicated region
      $region41: #{tpu_custom_call.1} parent=5 // pred_check
        %p484 = pneg %p483
      $region42: #{tpu_custom_call.1} parent=5 // pred_check_branch
        %486 = sbr.rel (%p484) target = $region44
      $region43: #{tpu_custom_call.1} parent=5 // pred_region
        %s487 = ssub.s32 %s15, 2
        // Predicated region
        $region45: #{tpu_custom_call.1} parent=43 // pred_check
          %p488 = pneg %p107
        $region46: #{tpu_custom_call.1} parent=43 // pred_check_branch
          %490 = sbr.rel (%p488) target = $region48
        $region47: #{tpu_custom_call.1} parent=43 // pred_region
          %s491 = sand.u32 %s92, 1
          %s492 = scalar_lea.sflag [#allocation4], %s491
          %s493 = sand.u32 %s92, 1
          %s494 = smul.addr %s493, 24
          %s495 = scalar_lea.vmem [#allocation7], %s494
          %496 = dma.done %s492, 384
        $region48: #{tpu_custom_call.1} parent=43 // pred_fallthru
          _
      $region44: #{tpu_custom_call.1} parent=5 // pred_fallthru
        _
    $region6: #{tpu_custom_call.1} parent=1 // loop_footer
      %s19 = sadd.s32 1, %s15
    $region7: #{tpu_custom_call.1} parent=1 // loop_footer_branch
      %14 = sbr.rel target = $region3
    $region8: #{tpu_custom_call.1} parent=1 // loop_exit
      _
    %497 = vsyncpa [#allocation3], 1
    %s498 = scalar_lea.sflag [#allocation3], 1
    %499 = vsyncpa %s498, 1
    %500 = vsyncpa [#allocation6], 1
    %501 = vsyncpa [#allocation4], 1
    %s502 = scalar_lea.sflag [#allocation4], 1
    %503 = vsyncpa %s502, 1

</llo_original>
